<compile_context>
chip_gen: v6e
topology: v6e:2x2x1
jax: 0.10.0
libtpu: 0.0.40
codegen_flags: <defaults>
</compile_context>

<pallas_src>
import math

import jax
import jax.numpy as jnp
from jax import lax
from jax.experimental import pallas as pl
from jax.experimental.pallas import tpu as pltpu


def make_mhsa_kernel(num_heads: int, head_dim: int, q_tile: int, compute_dtype):
    C = num_heads * head_dim

    def kernel(x_ref, wqkv_ref, bqkv_ref, wp_ref, bp_ref, o_ref,
               qkv_scratch, ctx_scratch):
        qi = pl.program_id(1)

        # ---- Fused QKV projection: once per batch element (qi == 0). -------
        # One (N, C) x (C, 3C) MXU call with f32 accumulation; result kept in
        # a VMEM scratch that persists across all query tiles of this batch
        # element (query-tile grid axis is "arbitrary" to allow this carry).
        @pl.when(qi == 0)
        def _():
            x = x_ref[0].astype(compute_dtype)                       # (N, C)
            qkv = jnp.dot(x, wqkv_ref[...],
                          preferred_element_type=jnp.float32)        # (N, 3C) f32
            qkv = qkv + bqkv_ref[...]                                 # bias in f32
            qkv_scratch[...] = qkv.astype(compute_dtype)

        # Query rows for this tile (sublane-aligned dynamic row slice).
        row0 = pl.multiple_of(qi * q_tile, q_tile)
        q_rows = qkv_scratch[pl.ds(row0, q_tile), :]                  # (TQ, 3C)

        # ---- Per-head attention (static loop; each head's scores die after
        #      its result is stored into its column slab of ctx_scratch). -----
        for h in range(num_heads):
            lo = h * head_dim
            hi = lo + head_dim
            qh = q_rows[:, lo:hi]                                     # (TQ, hd)
            kh = qkv_scratch[:, C + lo:C + hi]                        # (N, hd)
            vh = qkv_scratch[:, 2 * C + lo:2 * C + hi]                # (N, hd)

            # Contract last dims directly — no kh.T / XLU transpose.
            s = lax.dot_general(qh, kh, (((1,), (1,)), ((), ())),
                                preferred_element_type=jnp.float32)   # (TQ, N)
            # Scale is pre-folded into the Q weights; softmax math in f32.
            m = jnp.max(s, axis=-1, keepdims=True)
            p = jnp.exp(s - m)                                        # unnormalized
            l = jnp.sum(p, axis=-1, keepdims=True)                    # (TQ, 1)

            ctx = jnp.dot(p.astype(compute_dtype), vh,
                          preferred_element_type=jnp.float32)         # (TQ, hd)
            # Deferred normalization: scale the (TQ, hd) result, not (TQ, N),
            # with the EUP approximate reciprocal (free slot).
            ctx = ctx * pl.reciprocal(l, approx=True)
            ctx_scratch[:, lo:hi] = ctx.astype(compute_dtype)

        # ---- Output projection; single store per query tile. ---------------
        y = jnp.dot(ctx_scratch[...], wp_ref[...],
                    preferred_element_type=jnp.float32) + bp_ref[...]
        o_ref[0] = y.astype(o_ref.dtype)

    return kernel


def prepare_kernel_params(raw, dim, compute_dtype):
    """Pack PyTorch-layout weights for the kernel.

    nn.Linear computes x @ W.T + b, so weights are pre-transposed; wq/wk/wv are
    fused into one (C, 3C) matrix; the attention scale (dim ** -0.5, full dim
    as in the PyTorch module) is folded into the Q columns / Q bias so the
    kernel needs no per-score multiply.  Weights are cast to compute_dtype for
    the MXU; biases stay f32 (added to the f32 accumulator in-kernel).
    """
    scale = dim ** (-0.5)
    w_qkv = raw["w_qkv"].T                                            # (C, 3C)
    b_qkv = raw["b_qkv"]                                              # (3C,)
    col_scale = jnp.concatenate([jnp.full((dim,), scale, jnp.float32),
                                 jnp.ones((2 * dim,), jnp.float32)])
    w_qkv = w_qkv * col_scale[None, :]
    b_qkv = b_qkv * col_scale
    return dict(
        w_qkv=w_qkv.astype(compute_dtype),
        b_qkv=b_qkv.reshape(1, 3 * dim).astype(jnp.float32),
        w_proj=raw["w_proj"].T.astype(compute_dtype),
        b_proj=raw["b_proj"].reshape(1, dim).astype(jnp.float32),
    )


def multi_head_self_attention(x, raw_params, *, heads,
                              compute_dtype=jnp.bfloat16, q_tile=None):
    """x: (B, N, C) float32.  raw_params: PyTorch-layout weights (see init)."""
    B, N, C = x.shape
    assert C % heads == 0
    head_dim = C // heads

    if q_tile is None:
        q_tile = N if N <= 128 else 128
    assert N % q_tile == 0, "sequence length must be divisible by the query tile"

    kp = prepare_kernel_params(raw_params, C, compute_dtype)
    kernel = make_mhsa_kernel(heads, head_dim, q_tile, compute_dtype)

    const = lambda b, qi: (0, 0)

    out = pl.pallas_call(
        kernel,
        out_shape=jax.ShapeDtypeStruct((B, N, C), x.dtype),
        grid_spec=pltpu.PrefetchScalarGridSpec(
            num_scalar_prefetch=0,
            grid=(B, N // q_tile),
            in_specs=[
                pl.BlockSpec((1, N, C), lambda b, qi: (b, 0, 0)),   # x (full seq)
                pl.BlockSpec((C, 3 * C), const),                    # fused W_qkv
                pl.BlockSpec((1, 3 * C), const),                    # fused b_qkv (f32)
                pl.BlockSpec((C, C), const),                        # W_proj
                pl.BlockSpec((1, C), const),                        # b_proj (f32)
            ],
            out_specs=pl.BlockSpec((1, q_tile, C), lambda b, qi: (b, qi, 0)),
            scratch_shapes=[
                pltpu.VMEM((N, 3 * C), compute_dtype),   # fused qkv activations
                pltpu.VMEM((q_tile, C), compute_dtype),  # merged head outputs
            ],
        ),
        compiler_params=pltpu.CompilerParams(
            # B is independent (megacore-parallel); the query-tile axis carries
            # the qkv scratch across steps, so it must stay "arbitrary".
            dimension_semantics=("parallel", "arbitrary"),
            vmem_limit_bytes=32 * 1024 * 1024,
        ),
    )(x, kp["w_qkv"], kp["b_qkv"], kp["w_proj"], kp["b_proj"])
    return out


def reference_mhsa(x, raw, *, heads):
    """Pure-JAX f32 reference matching the PyTorch forward exactly."""
    B, N, C = x.shape
    hd = C // heads
    scale = C ** (-0.5)
    qkv = x @ raw["w_qkv"].T + raw["b_qkv"]                           # (B, N, 3C)
    qkv = qkv.reshape(B, N, 3, heads, hd).transpose(2, 0, 3, 1, 4)
    q, k, v = qkv[0], qkv[1], qkv[2]                                  # (B, H, N, hd)
    attn = (q @ jnp.swapaxes(k, -2, -1)) * scale
    attn = jax.nn.softmax(attn, axis=-1)
    out = jnp.swapaxes(attn @ v, 1, 2).reshape(B, N, C)
    return out @ raw["w_proj"].T + raw["b_proj"]


def init_params(key, dim):
    """Deterministic synthetic parameters in PyTorch nn.Linear layout."""
    k1, k2, k3, k4 = jax.random.split(key, 4)
    bound = 1.0 / math.sqrt(dim)
    return dict(
        w_qkv=jax.random.uniform(k1, (3 * dim, dim), jnp.float32, -bound, bound),
        b_qkv=jax.random.uniform(k2, (3 * dim,), jnp.float32, -bound, bound),
        w_proj=jax.random.uniform(k3, (dim, dim), jnp.float32, -bound, bound),
        b_proj=jax.random.uniform(k4, (dim,), jnp.float32, -bound, bound),
    )


if __name__ == "__main__":
    key = jax.random.PRNGKey(0)
    test_cases = [
        # (B, N, C, heads, compute_dtype, tol) — first case matches the module
        # spec's toy shape; second exercises bf16 MXU, lane-aligned C and a
        # multi-tile query grid.
        (2, 8, 32, 4, jnp.float32, 5e-3),
        (2, 256, 128, 4, jnp.bfloat16, 5e-2),
    ]
    for (B, N, C, HEADS, cdt, tol) in test_cases:
        key, kx, kp = jax.random.split(key, 3)
        x = jax.random.normal(kx, (B, N, C), dtype=jnp.float32)
        raw = init_params(kp, C)

        out = multi_head_self_attention(x, raw, heads=HEADS, compute_dtype=cdt)
        out = jax.block_until_ready(out)

        ref = reference_mhsa(x, raw, heads=HEADS)
        assert out.shape == (B, N, C)
        assert jnp.allclose(out, ref, atol=tol, rtol=tol), (
            f"max abs err = {jnp.max(jnp.abs(out - ref))} (dtype={cdt})")

    print("KERNEL_OK")
</pallas_src>

<mosaic_0001>
module attributes {stable_mosaic.version = 11 : i64} {
  func.func @kernel(%arg0: i32, %arg1: i32, %arg2: memref<1x8x32xf32, #tpu.memory_space<vmem>>, %arg3: memref<32x96xf32, #tpu.memory_space<vmem>>, %arg4: memref<1x96xf32, #tpu.memory_space<vmem>>, %arg5: memref<32x32xf32, #tpu.memory_space<vmem>>, %arg6: memref<1x32xf32, #tpu.memory_space<vmem>>, %arg7: memref<1x8x32xf32, #tpu.memory_space<vmem>>, %arg8: memref<8x96xf32, #tpu.memory_space<vmem>>, %arg9: memref<8x32xf32, #tpu.memory_space<vmem>>) attributes {dimension_semantics = [#tpu.dimension_semantics<parallel>, #tpu.dimension_semantics<arbitrary>], iteration_bounds = array<i64: 2, 1>, scalar_prefetch = 0 : i64, scratch_operands = 2 : i64, tpu.core_type = #tpu.core_type<tc>, window_params = [{transform_indices = @transform_0, window_bounds = array<i64: 1, 8, 32>}, {pipeline_mode = #tpu.pipeline_mode<synchronous>, transform_indices = @transform_1, window_bounds = array<i64: 32, 96>}, {pipeline_mode = #tpu.pipeline_mode<synchronous>, transform_indices = @transform_2, window_bounds = array<i64: 1, 96>}, {pipeline_mode = #tpu.pipeline_mode<synchronous>, transform_indices = @transform_3, window_bounds = array<i64: 32, 32>}, {pipeline_mode = #tpu.pipeline_mode<synchronous>, transform_indices = @transform_4, window_bounds = array<i64: 1, 32>}, {transform_indices = @transform_5, window_bounds = array<i64: 1, 8, 32>}]} {
    %c0_i32 = arith.constant 0 : i32
    %0 = arith.cmpi eq, %arg1, %c0_i32 : i32
    %1 = arith.extui %0 : i1 to i32
    %c0_i32_0 = arith.constant 0 : i32
    %2 = arith.cmpi ne, %1, %c0_i32_0 : i32
    scf.if %2 {
      %c0_39 = arith.constant 0 : index
      %c0_40 = arith.constant 0 : index
      %c0_41 = arith.constant 0 : index
      %80 = vector.load %arg2[%c0_39, %c0_40, %c0_41] : memref<1x8x32xf32, #tpu.memory_space<vmem>>, vector<1x8x32xf32>
      %81 = vector.shape_cast %80 : vector<1x8x32xf32> to vector<8x32xf32>
      %c0_42 = arith.constant 0 : index
      %c0_43 = arith.constant 0 : index
      %82 = vector.load %arg3[%c0_42, %c0_43] : memref<32x96xf32, #tpu.memory_space<vmem>>, vector<32x96xf32>
      %cst_44 = arith.constant dense<0.000000e+00> : vector<8x96xf32>
      %83 = tpu.matmul %81, %82, %cst_44 {dimension_numbers = #tpu.dot_dimension_numbers<[1], [0], [0], [1], [0, 0, 1, 1], [], []>} : vector<8x32xf32>, vector<32x96xf32>, vector<8x96xf32> -> vector<8x96xf32>
      %c0_45 = arith.constant 0 : index
      %c0_46 = arith.constant 0 : index
      %84 = vector.load %arg4[%c0_45, %c0_46] : memref<1x96xf32, #tpu.memory_space<vmem>>, vector<1x96xf32>
      %85 = vector.broadcast %84 : vector<1x96xf32> to vector<8x96xf32>
      %86 = arith.addf %83, %85 : vector<8x96xf32>
      %c0_47 = arith.constant 0 : index
      %c0_48 = arith.constant 0 : index
      %87 = vector.load %arg8[%c0_47, %c0_48] : memref<8x96xf32, #tpu.memory_space<vmem>>, vector<8x96xf32>
      tpu.vector_store %arg8[%c0_47, %c0_48], %86 {strides = array<i32>} : memref<8x96xf32, #tpu.memory_space<vmem>>, vector<8x96xf32>,
    } else {
    }
    %c8_i32 = arith.constant 8 : i32
    %3 = arith.muli %arg1, %c8_i32 : i32
    %4 = tpu.assume_multiple %3, 8 : i32
    %5 = arith.index_cast %4 : i32 to index
    %c0 = arith.constant 0 : index
    %6 = vector.load %arg8[%5, %c0] : memref<8x96xf32, #tpu.memory_space<vmem>>, vector<8x96xf32>
    %7 = vector.extract_strided_slice %6 {offsets = [0, 0], sizes = [8, 8], strides = [1, 1]} : vector<8x96xf32> to vector<8x8xf32>
    %c0_1 = arith.constant 0 : index
    %c32 = arith.constant 32 : index
    %8 = vector.load %arg8[%c0_1, %c32] : memref<8x96xf32, #tpu.memory_space<vmem>>, vector<8x8xf32>
    %c0_2 = arith.constant 0 : index
    %c64 = arith.constant 64 : index
    %9 = vector.load %arg8[%c0_2, %c64] : memref<8x96xf32, #tpu.memory_space<vmem>>, vector<8x8xf32>
    %cst = arith.constant dense<0.000000e+00> : vector<8x8xf32>
    %10 = tpu.matmul %7, %8, %cst {dimension_numbers = #tpu.dot_dimension_numbers<[1], [1], [0], [0], [0, 0, 1, 0], [], []>} : vector<8x8xf32>, vector<8x8xf32>, vector<8x8xf32> -> vector<8x8xf32>
    %cst_3 = arith.constant dense<0xFF800000> : vector<8xf32>
    %11 = vector.multi_reduction <maximumf>, %10, %cst_3 [1] : vector<8x8xf32> to vector<8xf32>
    %12 = vector.shape_cast %11 : vector<8xf32> to vector<8x1xf32>
    %13 = vector.broadcast %12 : vector<8x1xf32> to vector<8x8xf32>
    %14 = arith.subf %10, %13 : vector<8x8xf32>
    %15 = math.exp %14 : vector<8x8xf32>
    %cst_4 = arith.constant dense<0.000000e+00> : vector<8xf32>
    %16 = vector.multi_reduction <add>, %15, %cst_4 [1] : vector<8x8xf32> to vector<8xf32>
    %17 = vector.shape_cast %16 : vector<8xf32> to vector<8x1xf32>
    %cst_5 = arith.constant dense<0.000000e+00> : vector<8x8xf32>
    %18 = tpu.matmul %15, %9, %cst_5 {dimension_numbers = #tpu.dot_dimension_numbers<[1], [0], [0], [1], [0, 0, 1, 1], [], []>} : vector<8x8xf32>, vector<8x8xf32>, vector<8x8xf32> -> vector<8x8xf32>
    %19 = tpu.reciprocal %17 {approx = true} : vector<8x1xf32> -> vector<8x1xf32>
    %20 = vector.broadcast %19 : vector<8x1xf32> to vector<8x8xf32>
    %21 = arith.mulf %18, %20 : vector<8x8xf32>
    %c0_6 = arith.constant 0 : index
    %c0_7 = arith.constant 0 : index
    %22 = vector.load %arg9[%c0_6, %c0_7] : memref<8x32xf32, #tpu.memory_space<vmem>>, vector<8x8xf32>
    tpu.vector_store %arg9[%c0_6, %c0_7], %21 {strides = array<i32>} : memref<8x32xf32, #tpu.memory_space<vmem>>, vector<8x8xf32>,
    %23 = vector.extract_strided_slice %6 {offsets = [0, 8], sizes = [8, 8], strides = [1, 1]} : vector<8x96xf32> to vector<8x8xf32>
    %c0_8 = arith.constant 0 : index
    %c40 = arith.constant 40 : index
    %24 = vector.load %arg8[%c0_8, %c40] : memref<8x96xf32, #tpu.memory_space<vmem>>, vector<8x8xf32>
    %c0_9 = arith.constant 0 : index
    %c72 = arith.constant 72 : index
    %25 = vector.load %arg8[%c0_9, %c72] : memref<8x96xf32, #tpu.memory_space<vmem>>, vector<8x8xf32>
    %cst_10 = arith.constant dense<0.000000e+00> : vector<8x8xf32>
    %26 = tpu.matmul %23, %24, %cst_10 {dimension_numbers = #tpu.dot_dimension_numbers<[1], [1], [0], [0], [0, 0, 1, 0], [], []>} : vector<8x8xf32>, vector<8x8xf32>, vector<8x8xf32> -> vector<8x8xf32>
    %cst_11 = arith.constant dense<0xFF800000> : vector<8xf32>
    %27 = vector.multi_reduction <maximumf>, %26, %cst_11 [1] : vector<8x8xf32> to vector<8xf32>
    %28 = vector.shape_cast %27 : vector<8xf32> to vector<8x1xf32>
    %29 = vector.broadcast %28 : vector<8x1xf32> to vector<8x8xf32>
    %30 = arith.subf %26, %29 : vector<8x8xf32>
    %31 = math.exp %30 : vector<8x8xf32>
    %cst_12 = arith.constant dense<0.000000e+00> : vector<8xf32>
    %32 = vector.multi_reduction <add>, %31, %cst_12 [1] : vector<8x8xf32> to vector<8xf32>
    %33 = vector.shape_cast %32 : vector<8xf32> to vector<8x1xf32>
    %cst_13 = arith.constant dense<0.000000e+00> : vector<8x8xf32>
    %34 = tpu.matmul %31, %25, %cst_13 {dimension_numbers = #tpu.dot_dimension_numbers<[1], [0], [0], [1], [0, 0, 1, 1], [], []>} : vector<8x8xf32>, vector<8x8xf32>, vector<8x8xf32> -> vector<8x8xf32>
    %35 = tpu.reciprocal %33 {approx = true} : vector<8x1xf32> -> vector<8x1xf32>
    %36 = vector.broadcast %35 : vector<8x1xf32> to vector<8x8xf32>
    %37 = arith.mulf %34, %36 : vector<8x8xf32>
    %c0_14 = arith.constant 0 : index
    %c8 = arith.constant 8 : index
    %38 = vector.load %arg9[%c0_14, %c8] : memref<8x32xf32, #tpu.memory_space<vmem>>, vector<8x8xf32>
    tpu.vector_store %arg9[%c0_14, %c8], %37 {strides = array<i32>} : memref<8x32xf32, #tpu.memory_space<vmem>>, vector<8x8xf32>,
    %39 = vector.extract_strided_slice %6 {offsets = [0, 16], sizes = [8, 8], strides = [1, 1]} : vector<8x96xf32> to vector<8x8xf32>
    %c0_15 = arith.constant 0 : index
    %c48 = arith.constant 48 : index
    %40 = vector.load %arg8[%c0_15, %c48] : memref<8x96xf32, #tpu.memory_space<vmem>>, vector<8x8xf32>
    %c0_16 = arith.constant 0 : index
    %c80 = arith.constant 80 : index
    %41 = vector.load %arg8[%c0_16, %c80] : memref<8x96xf32, #tpu.memory_space<vmem>>, vector<8x8xf32>
    %cst_17 = arith.constant dense<0.000000e+00> : vector<8x8xf32>
    %42 = tpu.matmul %39, %40, %cst_17 {dimension_numbers = #tpu.dot_dimension_numbers<[1], [1], [0], [0], [0, 0, 1, 0], [], []>} : vector<8x8xf32>, vector<8x8xf32>, vector<8x8xf32> -> vector<8x8xf32>
    %cst_18 = arith.constant dense<0xFF800000> : vector<8xf32>
    %43 = vector.multi_reduction <maximumf>, %42, %cst_18 [1] : vector<8x8xf32> to vector<8xf32>
    %44 = vector.shape_cast %43 : vector<8xf32> to vector<8x1xf32>
    %45 = vector.broadcast %44 : vector<8x1xf32> to vector<8x8xf32>
    %46 = arith.subf %42, %45 : vector<8x8xf32>
    %47 = math.exp %46 : vector<8x8xf32>
    %cst_19 = arith.constant dense<0.000000e+00> : vector<8xf32>
    %48 = vector.multi_reduction <add>, %47, %cst_19 [1] : vector<8x8xf32> to vector<8xf32>
    %49 = vector.shape_cast %48 : vector<8xf32> to vector<8x1xf32>
    %cst_20 = arith.constant dense<0.000000e+00> : vector<8x8xf32>
    %50 = tpu.matmul %47, %41, %cst_20 {dimension_numbers = #tpu.dot_dimension_numbers<[1], [0], [0], [1], [0, 0, 1, 1], [], []>} : vector<8x8xf32>, vector<8x8xf32>, vector<8x8xf32> -> vector<8x8xf32>
    %51 = tpu.reciprocal %49 {approx = true} : vector<8x1xf32> -> vector<8x1xf32>
    %52 = vector.broadcast %51 : vector<8x1xf32> to vector<8x8xf32>
    %53 = arith.mulf %50, %52 : vector<8x8xf32>
    %c0_21 = arith.constant 0 : index
    %c16 = arith.constant 16 : index
    %54 = vector.load %arg9[%c0_21, %c16] : memref<8x32xf32, #tpu.memory_space<vmem>>, vector<8x8xf32>
    tpu.vector_store %arg9[%c0_21, %c16], %53 {strides = array<i32>} : memref<8x32xf32, #tpu.memory_space<vmem>>, vector<8x8xf32>,
    %55 = vector.extract_strided_slice %6 {offsets = [0, 24], sizes = [8, 8], strides = [1, 1]} : vector<8x96xf32> to vector<8x8xf32>
    %c0_22 = arith.constant 0 : index
    %c56 = arith.constant 56 : index
    %56 = vector.load %arg8[%c0_22, %c56] : memref<8x96xf32, #tpu.memory_space<vmem>>, vector<8x8xf32>
    %c0_23 = arith.constant 0 : index
    %c88 = arith.constant 88 : index
    %57 = vector.load %arg8[%c0_23, %c88] : memref<8x96xf32, #tpu.memory_space<vmem>>, vector<8x8xf32>
    %cst_24 = arith.constant dense<0.000000e+00> : vector<8x8xf32>
    %58 = tpu.matmul %55, %56, %cst_24 {dimension_numbers = #tpu.dot_dimension_numbers<[1], [1], [0], [0], [0, 0, 1, 0], [], []>} : vector<8x8xf32>, vector<8x8xf32>, vector<8x8xf32> -> vector<8x8xf32>
    %cst_25 = arith.constant dense<0xFF800000> : vector<8xf32>
    %59 = vector.multi_reduction <maximumf>, %58, %cst_25 [1] : vector<8x8xf32> to vector<8xf32>
    %60 = vector.shape_cast %59 : vector<8xf32> to vector<8x1xf32>
    %61 = vector.broadcast %60 : vector<8x1xf32> to vector<8x8xf32>
    %62 = arith.subf %58, %61 : vector<8x8xf32>
    %63 = math.exp %62 : vector<8x8xf32>
    %cst_26 = arith.constant dense<0.000000e+00> : vector<8xf32>
    %64 = vector.multi_reduction <add>, %63, %cst_26 [1] : vector<8x8xf32> to vector<8xf32>
    %65 = vector.shape_cast %64 : vector<8xf32> to vector<8x1xf32>
    %cst_27 = arith.constant dense<0.000000e+00> : vector<8x8xf32>
    %66 = tpu.matmul %63, %57, %cst_27 {dimension_numbers = #tpu.dot_dimension_numbers<[1], [0], [0], [1], [0, 0, 1, 1], [], []>} : vector<8x8xf32>, vector<8x8xf32>, vector<8x8xf32> -> vector<8x8xf32>
    %67 = tpu.reciprocal %65 {approx = true} : vector<8x1xf32> -> vector<8x1xf32>
    %68 = vector.broadcast %67 : vector<8x1xf32> to vector<8x8xf32>
    %69 = arith.mulf %66, %68 : vector<8x8xf32>
    %c0_28 = arith.constant 0 : index
    %c24 = arith.constant 24 : index
    %70 = vector.load %arg9[%c0_28, %c24] : memref<8x32xf32, #tpu.memory_space<vmem>>, vector<8x8xf32>
    tpu.vector_store %arg9[%c0_28, %c24], %69 {strides = array<i32>} : memref<8x32xf32, #tpu.memory_space<vmem>>, vector<8x8xf32>,
    %c0_29 = arith.constant 0 : index
    %c0_30 = arith.constant 0 : index
    %71 = vector.load %arg9[%c0_29, %c0_30] : memref<8x32xf32, #tpu.memory_space<vmem>>, vector<8x32xf32>
    %c0_31 = arith.constant 0 : index
    %c0_32 = arith.constant 0 : index
    %72 = vector.load %arg5[%c0_31, %c0_32] : memref<32x32xf32, #tpu.memory_space<vmem>>, vector<32x32xf32>
    %cst_33 = arith.constant dense<0.000000e+00> : vector<8x32xf32>
    %73 = tpu.matmul %71, %72, %cst_33 {dimension_numbers = #tpu.dot_dimension_numbers<[1], [0], [0], [1], [0, 0, 1, 1], [], []>} : vector<8x32xf32>, vector<32x32xf32>, vector<8x32xf32> -> vector<8x32xf32>
    %c0_34 = arith.constant 0 : index
    %c0_35 = arith.constant 0 : index
    %74 = vector.load %arg6[%c0_34, %c0_35] : memref<1x32xf32, #tpu.memory_space<vmem>>, vector<1x32xf32>
    %75 = vector.broadcast %74 : vector<1x32xf32> to vector<8x32xf32>
    %76 = arith.addf %73, %75 : vector<8x32xf32>
    %c0_36 = arith.constant 0 : index
    %c0_37 = arith.constant 0 : index
    %c0_38 = arith.constant 0 : index
    %77 = vector.load %arg7[%c0_36, %c0_37, %c0_38] : memref<1x8x32xf32, #tpu.memory_space<vmem>>, vector<1x8x32xf32>
    %78 = vector.shape_cast %77 : vector<1x8x32xf32> to vector<8x32xf32>
    %79 = vector.shape_cast %76 : vector<8x32xf32> to vector<1x8x32xf32>
    tpu.vector_store %arg7[%c0_36, %c0_37, %c0_38], %79 {strides = array<i32>} : memref<1x8x32xf32, #tpu.memory_space<vmem>>, vector<1x8x32xf32>,
    return
  }
  func.func @transform_0(%arg0: i32, %arg1: i32) -> (i32, i32, i32) {
    %c0_i32 = arith.constant 0 : i32
    %c0_i32_0 = arith.constant 0 : i32
    %c0_i32_1 = arith.constant 0 : i32
    return %arg0, %c0_i32, %c0_i32_0 : i32, i32, i32
  }
  func.func @transform_1(%arg0: i32, %arg1: i32) -> (i32, i32) {
    %c0_i32 = arith.constant 0 : i32
    %c0_i32_0 = arith.constant 0 : i32
    %c0_i32_1 = arith.constant 0 : i32
    return %c0_i32, %c0_i32_0 : i32, i32
  }
  func.func @transform_2(%arg0: i32, %arg1: i32) -> (i32, i32) {
    %c0_i32 = arith.constant 0 : i32
    %c0_i32_0 = arith.constant 0 : i32
    %c0_i32_1 = arith.constant 0 : i32
    return %c0_i32, %c0_i32_0 : i32, i32
  }
  func.func @transform_3(%arg0: i32, %arg1: i32) -> (i32, i32) {
    %c0_i32 = arith.constant 0 : i32
    %c0_i32_0 = arith.constant 0 : i32
    %c0_i32_1 = arith.constant 0 : i32
    return %c0_i32, %c0_i32_0 : i32, i32
  }
  func.func @transform_4(%arg0: i32, %arg1: i32) -> (i32, i32) {
    %c0_i32 = arith.constant 0 : i32
    %c0_i32_0 = arith.constant 0 : i32
    %c0_i32_1 = arith.constant 0 : i32
    return %c0_i32, %c0_i32_0 : i32, i32
  }
  func.func @transform_5(%arg0: i32, %arg1: i32) -> (i32, i32, i32) {
    %c0_i32 = arith.constant 0 : i32
    %c0_i32_0 = arith.constant 0 : i32
    return %arg0, %arg1, %c0_i32 : i32, i32, i32
  }
}

</mosaic_0001>

<llo_original>
// kernel: tpu_custom_call.1
$region0: #{tpu_custom_call.1}
  #allocation0 [shape = 'u32[]', space=smem, size = 0x4, offset = 0x4, fixed_abs, tag = 'smem constant byte address 0x4 - core index']
  #allocation1 [shape = 'u32[144,128]{1,0:T(1,128)}', space=vmem, size = 0x12000, scoped, tag = 'internal scratch']
  #allocation2 [shape = 'f32[8,96]{1,0:T(8,128)}', space=vmem, size = 0x1000, scoped, tag = 'scratch operand']
  #allocation3 [shape = 'f32[8,32]{1,0:T(8,128)}', space=vmem, size = 0x1000, scoped, tag = 'scratch operand']
  %s0 = inlined_call_operand.hbm [shape: f32[2,8,32], index: 0, kind: input, shape index: {}]
  %s1 = inlined_call_operand.hbm [shape: f32[32,96], index: 1, kind: input, shape index: {}]
  %s2 = inlined_call_operand.vmem [shape: f32[1,96], index: 2, kind: input, shape index: {}]
  %s3 = inlined_call_operand.hbm [shape: f32[32,32], index: 3, kind: input, shape index: {}]
  %s4 = inlined_call_operand.vmem [shape: f32[1,32], index: 4, kind: input, shape index: {}]
  %s5 = inlined_call_operand.hbm [shape: f32[2,8,32], index: 5, kind: output, shape index: {}]
  %s6 = sld [smem:[#allocation0]]
  $region69: #{tpu_custom_call.1} parent=0
    _
  %s8 = ssub.s32 1, %s6
  %s9 = scalar_select 0, %s8, %s6
  $region1: #{tpu_custom_call.1} parent=0
    #allocation4 [shape = 'u8[8192]{0}', space=vmem, size = 0x2000, scoped, tag = 'input window, operand 0']
    #allocation5 [shape = 's32[2]{0}', space=sflag, size = 0x8, scoped, tag = 'scoped memory for tpu_custom_call.1']
    #allocation6 [shape = 's32[2]{0}', space=sflag, size = 0x8, scoped, tag = 'scoped memory for tpu_custom_call.1']
    #allocation7 [shape = 'u8[16384]{0}', space=vmem, size = 0x4000, scoped, tag = 'input window, operand 1, single buffered']
    #allocation8 [shape = 's32[1]{0}', space=sflag, size = 0x4, scoped, tag = 'scoped memory for tpu_custom_call.1']
    #allocation9 [shape = 'u8[16384]{0}', space=vmem, size = 0x4000, scoped, tag = 'input window, operand 3, single buffered']
    #allocation10 [shape = 'u8[8192]{0}', space=vmem, size = 0x2000, scoped, tag = 'output window, operand 0']
    %10 = vsyncpa [#allocation5], 0
    %s11 = scalar_lea.sflag [#allocation5], 1
    %12 = vsyncpa %s11, 0
    %13 = vsyncpa [#allocation8], 0
    %14 = vsyncpa [#allocation6], 0
    %s15 = scalar_lea.sflag [#allocation6], 1
    %16 = vsyncpa %s15, 0
    loop: start=0, step=1, limit=4
    $region2: #{tpu_custom_call.1} parent=1 // loop_pre_header
      _
    $region3: #{tpu_custom_call.1} parent=1 // loop_header
      %s18 = sphi 0, %s22
      %p19 = scmp.ge.s32.totalorder %s18, 4
      %s25 = sphi 0, %s37
      %s26 = sphi 0, %s33
      %s27 = sphi 0, %s25
      %s28 = sphi 0, %s26
      %s29 = sphi 0, %s27
      %s30 = sphi 0, %s28
      %s40 = sphi 0, %s42
      %s43 = sphi 0, %s40
      %s44 = sphi 0, %s43
      %s60 = sphi 0, %s44
      %s64 = sphi 0, %s64
      %s66 = sphi 0, %s64
      %s67 = sphi 0, %s66
      %s81 = sphi 0, %s67
      %s85 = sphi 0, %s85
      %s87 = sphi 0, %s85
      %s88 = sphi 0, %s87
      %s102 = sphi 0, %s88
      %s106 = sphi 0, %s106
      %s108 = sphi 0, %s106
      %s109 = sphi 0, %s108
      %s123 = sphi 0, %s109
      %s127 = sphi 0, %s127
      %s129 = sphi 0, %s127
      %s130 = sphi 0, %s129
      %s144 = sphi 0, %s130
      %s152 = sphi 0, %s154
      %s155 = sphi 0, %s152
      %s156 = sphi 0, %s155
      %s172 = sphi 0, %s156
    $region4: #{tpu_custom_call.1} parent=1 // loop_header_branch
      %21 = sbr.rel (%p19) target = $region8
    $region5: #{tpu_custom_call.1} parent=1 // loop_body
      %s23 = ssub.s32 %s18, 1
      %s24 = ssub.s32 %s18, 2
      %s31 = sadd.s32 1, %s26
      %p32 = scmp.ge.s32.totalorder %s31, 1
      %s33 = scalar_select %p32, 0, %s31
      %s34 = sadd.s32 1, %s25
      %s35 = scalar_select %p32, %s34, %s25
      %p36 = scmp.ge.s32.totalorder %s35, 2
      %s37 = scalar_select %p36, 0, %s35
      %s38 = ssub.s32 %s25, %s37
      %p39 = scmp.eq.s32.totalorder %s38, 0
      %s41 = sadd.s32 %s40, 1
      %s42 = scalar_select %p39, %s40, %s41
      %p45 = pneg %p39
      %p46 = scmp.eq.s32.totalorder %s18, 1
      %p47 = por %p45, %p46
      %p48 = scmp.ne.s32.totalorder %s40, %s43
      %p49 = scmp.eq.s32.totalorder %s18, 0
      %p50 = por %p48, %p49
      %p51 = scmp.ne.s32.totalorder %s40, %s43
      %p52 = scmp.eq.s32.totalorder %s23, 1
      %p53 = por %p51, %p52
      %p54 = scmp.ne.s32.totalorder %s43, %s44
      %p55 = scmp.eq.s32.totalorder %s23, 0
      %p56 = por %p54, %p55
      %p57 = scmp.ne.s32.totalorder %s43, %s44
      %p58 = scmp.eq.s32.totalorder %s24, 1
      %p59 = por %p57, %p58
      %p61 = scmp.ne.s32.totalorder %s44, %s60
      %p62 = scmp.eq.s32.totalorder %s24, 0
      %p63 = por %p61, %p62
      %s65 = sadd.s32 %s64, 1
      %p68 = scmp.eq.s32.totalorder %s18, 1
      %p69 = scmp.ne.s32.totalorder %s64, %s66
      %p70 = scmp.eq.s32.totalorder %s18, 0
      %p71 = por %p69, %p70
      %p72 = scmp.ne.s32.totalorder %s64, %s66
      %p73 = scmp.eq.s32.totalorder %s23, 1
      %p74 = por %p72, %p73
      %p75 = scmp.ne.s32.totalorder %s66, %s67
      %p76 = scmp.eq.s32.totalorder %s23, 0
      %p77 = por %p75, %p76
      %p78 = scmp.ne.s32.totalorder %s66, %s67
      %p79 = scmp.eq.s32.totalorder %s24, 1
      %p80 = por %p78, %p79
      %p82 = scmp.ne.s32.totalorder %s67, %s81
      %p83 = scmp.eq.s32.totalorder %s24, 0
      %p84 = por %p82, %p83
      %s86 = sadd.s32 %s85, 1
      %p89 = scmp.eq.s32.totalorder %s18, 1
      %p90 = scmp.ne.s32.totalorder %s85, %s87
      %p91 = scmp.eq.s32.totalorder %s18, 0
      %p92 = por %p90, %p91
      %p93 = scmp.ne.s32.totalorder %s85, %s87
      %p94 = scmp.eq.s32.totalorder %s23, 1
      %p95 = por %p93, %p94
      %p96 = scmp.ne.s32.totalorder %s87, %s88
      %p97 = scmp.eq.s32.totalorder %s23, 0
      %p98 = por %p96, %p97
      %p99 = scmp.ne.s32.totalorder %s87, %s88
      %p100 = scmp.eq.s32.totalorder %s24, 1
      %p101 = por %p99, %p100
      %p103 = scmp.ne.s32.totalorder %s88, %s102
      %p104 = scmp.eq.s32.totalorder %s24, 0
      %p105 = por %p103, %p104
      %s107 = sadd.s32 %s106, 1
      %p110 = scmp.eq.s32.totalorder %s18, 1
      %p111 = scmp.ne.s32.totalorder %s106, %s108
      %p112 = scmp.eq.s32.totalorder %s18, 0
      %p113 = por %p111, %p112
      %p114 = scmp.ne.s32.totalorder %s106, %s108
      %p115 = scmp.eq.s32.totalorder %s23, 1
      %p116 = por %p114, %p115
      %p117 = scmp.ne.s32.totalorder %s108, %s109
      %p118 = scmp.eq.s32.totalorder %s23, 0
      %p119 = por %p117, %p118
      %p120 = scmp.ne.s32.totalorder %s108, %s109
      %p121 = scmp.eq.s32.totalorder %s24, 1
      %p122 = por %p120, %p121
      %p124 = scmp.ne.s32.totalorder %s109, %s123
      %p125 = scmp.eq.s32.totalorder %s24, 0
      %p126 = por %p124, %p125
      %s128 = sadd.s32 %s127, 1
      %p131 = scmp.eq.s32.totalorder %s18, 1
      %p132 = scmp.ne.s32.totalorder %s127, %s129
      %p133 = scmp.eq.s32.totalorder %s18, 0
      %p134 = por %p132, %p133
      %p135 = scmp.ne.s32.totalorder %s127, %s129
      %p136 = scmp.eq.s32.totalorder %s23, 1
      %p137 = por %p135, %p136
      %p138 = scmp.ne.s32.totalorder %s129, %s130
      %p139 = scmp.eq.s32.totalorder %s23, 0
      %p140 = por %p138, %p139
      %p141 = scmp.ne.s32.totalorder %s129, %s130
      %p142 = scmp.eq.s32.totalorder %s24, 1
      %p143 = por %p141, %p142
      %p145 = scmp.ne.s32.totalorder %s130, %s144
      %p146 = scmp.eq.s32.totalorder %s24, 0
      %p147 = por %p145, %p146
      %s148 = ssub.s32 %s25, %s37
      %s149 = ssub.s32 %s26, %s33
      %s150 = sor.u32 %s148, %s149
      %p151 = scmp.eq.s32.totalorder %s150, 0
      %s153 = sadd.s32 %s152, 1
      %s154 = scalar_select %p151, %s152, %s153
      %p157 = pneg %p151
      %p158 = scmp.eq.s32.totalorder %s18, 1
      %p159 = por %p157, %p158
      %p160 = scmp.ne.s32.totalorder %s152, %s155
      %p161 = scmp.eq.s32.totalorder %s18, 0
      %p162 = por %p160, %p161
      %p163 = scmp.ne.s32.totalorder %s152, %s155
      %p164 = scmp.eq.s32.totalorder %s23, 1
      %p165 = por %p163, %p164
      %p166 = scmp.ne.s32.totalorder %s155, %s156
      %p167 = scmp.eq.s32.totalorder %s23, 0
      %p168 = por %p166, %p167
      %p169 = scmp.ne.s32.totalorder %s155, %s156
      %p170 = scmp.eq.s32.totalorder %s24, 1
      %p171 = por %p169, %p170
      %p173 = scmp.ne.s32.totalorder %s156, %s172
      %p174 = scmp.eq.s32.totalorder %s24, 0
      %p175 = por %p173, %p174
      %p176 = scmp.le.s32.totalorder 1, %s18
      %p177 = scmp.lt.s32.totalorder %s18, 3
      %p178 = pnand %p176, %p177
      %p179 = pneg %p178
      // Predicated region
      $region9: #{tpu_custom_call.1} parent=5 // pred_check
        _
      $region10: #{tpu_custom_call.1} parent=5 // pred_check_branch
        %181 = sbr.rel (%p178) target = $region12
      $region11: #{tpu_custom_call.1} parent=5 // pred_region
        %s182 = ssub.s32 %s18, 1
        // Predicated region
        $region13: #{tpu_custom_call.1} parent=11 // pred_check
          %p183 = pneg %p77
        $region14: #{tpu_custom_call.1} parent=11 // pred_check_branch
          %185 = sbr.rel (%p183) target = $region16
        $region15: #{tpu_custom_call.1} parent=11 // pred_region
          %s187 = ssub.s32 512, 512
          %188 = vsyncadd [#allocation8], %s187
          %s189 = sshll.u32 [#allocation7], 4
          %s190 = int_to_ptr.vmem [resolvable:$true] %s189
          %195 = dma.hbm_to_vmem [thread:$0]  %s1, 512, %s190, [#allocation8], 128, 128, 8
        $region16: #{tpu_custom_call.1} parent=11 // pred_fallthru
          _
        // Predicated region
        $region17: #{tpu_custom_call.1} parent=11 // pred_check
          %p196 = pneg %p98
        $region18: #{tpu_custom_call.1} parent=11 // pred_check_branch
          %198 = sbr.rel (%p196) target = $region20
        $region19: #{tpu_custom_call.1} parent=11 // pred_region
          _
        $region20: #{tpu_custom_call.1} parent=11 // pred_fallthru
          _
        // Predicated region
        $region21: #{tpu_custom_call.1} parent=11 // pred_check
          %p199 = pneg %p119
        $region22: #{tpu_custom_call.1} parent=11 // pred_check_branch
          %201 = sbr.rel (%p199) target = $region24
        $region23: #{tpu_custom_call.1} parent=11 // pred_region
          %s203 = ssub.s32 512, 512
          %204 = vsyncadd [#allocation8], %s203
          %s205 = sshll.u32 [#allocation9], 4
          %s206 = int_to_ptr.vmem [resolvable:$true] %s205
          %211 = dma.hbm_to_vmem [thread:$0]  %s3, 512, %s206, [#allocation8], 128, 128, 8
        $region24: #{tpu_custom_call.1} parent=11 // pred_fallthru
          _
        // Predicated region
        $region25: #{tpu_custom_call.1} parent=11 // pred_check
          %p212 = pneg %p140
        $region26: #{tpu_custom_call.1} parent=11 // pred_check_branch
          %214 = sbr.rel (%p212) target = $region28
        $region27: #{tpu_custom_call.1} parent=11 // pred_region
          _
        $region28: #{tpu_custom_call.1} parent=11 // pred_fallthru
          _
      $region12: #{tpu_custom_call.1} parent=5 // pred_fallthru
        _
      %p215 = scmp.lt.s32.totalorder %s18, 2
      // Predicated region
      $region29: #{tpu_custom_call.1} parent=5 // pred_check
        %p216 = pneg %p215
      $region30: #{tpu_custom_call.1} parent=5 // pred_check_branch
        %218 = sbr.rel (%p216) target = $region32
      $region31: #{tpu_custom_call.1} parent=5 // pred_region
        // Predicated region
        $region33: #{tpu_custom_call.1} parent=31 // pred_check
          %p219 = pneg %p50
        $region34: #{tpu_custom_call.1} parent=31 // pred_check_branch
          %221 = sbr.rel (%p219) target = $region36
        $region35: #{tpu_custom_call.1} parent=31 // pred_region
          %s222 = sand.u32 %s40, 1
          %s223 = scalar_lea.sflag [#allocation5], %s222
          %s224 = sand.u32 %s40, 1
          %s225 = smul.addr %s224, 8
          %s226 = scalar_lea.vmem [#allocation4], %s225
          %s228 = ssub.s32 128, 128
          %229 = vsyncadd %s223, %s228
          %s230 = smul.addr %s25, 128
          %s231 = scalar_lea.hbm %s0, %s230
          %s233 = sshll.u32 %s226, 4
          %s234 = int_to_ptr.vmem [resolvable:$true] %s233
          %236 = dma.hbm_to_vmem [thread:$0]  %s231, 128, %s234, %s223
        $region36: #{tpu_custom_call.1} parent=31 // pred_fallthru
          _
      $region32: #{tpu_custom_call.1} parent=5 // pred_fallthru
        _
      %p237 = scmp.le.s32.totalorder 1, %s18
      %p238 = scmp.lt.s32.totalorder %s18, 3
      %p239 = pnand %p237, %p238
      %p240 = pneg %p239
      // Predicated region
      $region37: #{tpu_custom_call.1} parent=5 // pred_check
        _
      $region38: #{tpu_custom_call.1} parent=5 // pred_check_branch
        %242 = sbr.rel (%p239) target = $region40
      $region39: #{tpu_custom_call.1} parent=5 // pred_region
        %s243 = ssub.s32 %s18, 1
        %s244 = sand.u32 %s43, 1
        %s245 = scalar_lea.sflag [#allocation5], %s244
        %s246 = sand.u32 %s43, 1
        %s247 = smul.addr %s246, 8
        %s248 = scalar_lea.vmem [#allocation4], %s247
        // Predicated region
        $region41: #{tpu_custom_call.1} parent=39 // pred_check
          %p249 = pneg %p56
        $region42: #{tpu_custom_call.1} parent=39 // pred_check_branch
          %251 = sbr.rel (%p249) target = $region44
        $region43: #{tpu_custom_call.1} parent=39 // pred_region
          %252 = dma.done %s245, 128
        $region44: #{tpu_custom_call.1} parent=39 // pred_fallthru
          _
        // Predicated region
        $region45: #{tpu_custom_call.1} parent=39 // pred_check
          %p253 = pneg %p77
        $region46: #{tpu_custom_call.1} parent=39 // pred_check_branch
          %255 = sbr.rel (%p253) target = $region48
        $region47: #{tpu_custom_call.1} parent=39 // pred_region
          %256 = dma.done [#allocation8], 512
        $region48: #{tpu_custom_call.1} parent=39 // pred_fallthru
          _
        // Predicated region
        $region49: #{tpu_custom_call.1} parent=39 // pred_check
          %p257 = pneg %p119
        $region50: #{tpu_custom_call.1} parent=39 // pred_check_branch
          %259 = sbr.rel (%p257) target = $region52
        $region51: #{tpu_custom_call.1} parent=39 // pred_region
          %260 = dma.done [#allocation8], 512
        $region52: #{tpu_custom_call.1} parent=39 // pred_fallthru
          _
        %s261 = sand.u32 %s43, 1
        %s262 = scalar_lea.sflag [#allocation5], %s261
        %s263 = sand.u32 %s43, 1
        %s264 = smul.addr %s263, 8
        %s265 = scalar_lea.vmem [#allocation4], %s264
        %p266 = pneg %p56
        %p267 = pneg %p53
        %p268 = pneg %p77
        %p269 = pneg %p74
        %p270 = pneg %p98
        %p271 = pneg %p95
        %p272 = pneg %p119
        %p273 = pneg %p116
        %p274 = pneg %p140
        %p275 = pneg %p137
        %p276 = pneg %p168
        %p277 = pneg %p165
        %s278 = sand.u32 %s155, 1
        %s279 = scalar_lea.sflag [#allocation6], %s278
        %s280 = sand.u32 %s155, 1
        %s281 = smul.addr %s280, 8
        %s282 = scalar_lea.vmem [#allocation10], %s281
        %p283 = scmp.eq.s32.totalorder %s28, 0
        // Predicated region
        $region53: #{tpu_custom_call.1} parent=39 // pred_check
          %p284 = pneg %p283
        $region54: #{tpu_custom_call.1} parent=39 // pred_check_branch
          %286 = sbr.rel (%p284) target = $region56
        $region55: #{tpu_custom_call.1} parent=39 // pred_region
          %v287 = vld [vmem:[%s248] sm:$0xff]
          %v288 = vld [vmem:[#allocation7] sm:$0xff]
          %v289 = vld [vmem:[#allocation7 + $0x8] sm:$0xff]
          %v290 = vld [vmem:[#allocation7 + $0x10] sm:$0xff]
          %v291 = vld [vmem:[#allocation7 + $0x18] sm:$0xff]
          %v292 = vld [vmem:[%s2] sm:$0x1]
          %v294 = vlaneseq
          %v295 = vshrl.u32 %v294, 7
          %v296 = vsub.s32 0, %v295
          %v297 = vrot.slane %v292, %v296
          %vm299 = vcmask 261120
          %v301 = vsel %vm299, %v287, 0
          %303 = vmatprep.subr.mxu0 0.0
          %304 = vmatpush1.msra.mxu0 0.0
          %305 = vmatprep.subr.mxu0 0.0
          %306 = vmatpush1.msra.mxu0 0.0
          %307 = vmatprep.subr.mxu0 0.0
          %308 = vmatpush1.msra.mxu0 0.0
          %309 = vmatprep.subr.mxu0 0.0
          %310 = vmatpush1.msra.mxu0 0.0
          %311 = vmatprep.subr.mxu0 0.0
          %312 = vmatpush1.msra.mxu0 0.0
          %313 = vmatprep.subr.mxu0 0.0
          %314 = vmatpush1.msra.mxu0 0.0
          %315 = vmatprep.subr.mxu0 0.0
          %316 = vmatpush1.msra.mxu0 0.0
          %317 = vmatprep.subr.mxu0 0.0
          %318 = vmatpush1.msra.mxu0 0.0
          %319 = vmatprep.subr.mxu0 0.0
          %320 = vmatpush1.msra.mxu0 0.0
          %321 = vmatprep.subr.mxu0 0.0
          %322 = vmatpush1.msra.mxu0 0.0
          %323 = vmatprep.subr.mxu0 0.0
          %324 = vmatpush1.msra.mxu0 0.0
          %325 = vmatprep.subr.mxu0 0.0
          %326 = vmatpush1.msra.mxu0 0.0
          %327 = vmatprep.subr.mxu0 0.0
          %328 = vmatpush1.msra.mxu0 %v291
          %329 = vmatprep.subr.mxu0 0.0
          %330 = vmatpush1.msra.mxu0 %v290
          %331 = vmatprep.subr.mxu0 0.0
          %332 = vmatpush1.msra.mxu0 %v289
          %333 = vmatprep.subr.mxu0 0.0
          %334 = vmatpush1.msra.mxu0 %v288
          %335 = vmatprep.subr.mxu0 0.0
          %336 = vmatpush2.msra.mxu0 0.0
          %337 = vmatprep.subr.mxu0 0.0
          %338 = vmatpush2.msra.mxu0 0.0
          %339 = vmatprep.subr.mxu0 0.0
          %340 = vmatpush2.msra.mxu0 0.0
          %341 = vmatprep.subr.mxu0 0.0
          %342 = vmatpush2.msra.mxu0 0.0
          %343 = vmatprep.subr.mxu0 0.0
          %344 = vmatpush2.msra.mxu0 0.0
          %345 = vmatprep.subr.mxu0 0.0
          %346 = vmatpush2.msra.mxu0 0.0
          %347 = vmatprep.subr.mxu0 0.0
          %348 = vmatpush2.msra.mxu0 0.0
          %349 = vmatprep.subr.mxu0 0.0
          %350 = vmatpush2.msra.mxu0 0.0
          %351 = vmatprep.subr.mxu0 0.0
          %352 = vmatpush2.msra.mxu0 0.0
          %353 = vmatprep.subr.mxu0 0.0
          %354 = vmatpush2.msra.mxu0 0.0
          %355 = vmatprep.subr.mxu0 0.0
          %356 = vmatpush2.msra.mxu0 0.0
          %357 = vmatprep.subr.mxu0 0.0
          %358 = vmatpush2.msra.mxu0 0.0
          %359 = vmatprep.subr.mxu0 0.0
          %360 = vmatpush2.msra.mxu0 0.0
          %361 = vmatprep.subr.mxu0 0.0
          %362 = vmatpush2.msra.mxu0 0.0
          %363 = vmatprep.subr.mxu0 0.0
          %364 = vmatpush2.msra.mxu0 0.0
          %365 = vmatprep.subr.mxu0 0.0
          %366 = vmatpush2.msra.mxu0 0.0
          %367 = vmatprep.mubr.f32.mxu0 0.0
          %368 = vmatmul.mubr.f32.gmra.mxu0 %v301
          %v369 = vpop.f32.mrf.mxu0
          %v370 = vadd.f32 %v297, %v369
          %v371 = vpop.f32.mrf.mxu0
          %372 = vdwg.mxu0
          %vm373 = vcmask 785408
          %374 = vst.msk [vmem:[#allocation2] sm:$0xff] %vm373, %v370
        $region56: #{tpu_custom_call.1} parent=39 // pred_fallthru
          _
        %s375 = smul.u32 %s28, 8
        %s376 = scalar_lea.vmem [#allocation2], %s375
        %v377 = vld [vmem:[%s376] sm:$0xff]
        %v378 = vld [vmem:[#allocation2] sm:$0xff]
        %380 = vrot.lane.b32.xlu0 %v378, 96
        %v381 = vpop.permute.xlu0 %380
        %vm382 = vcmask 64512
        %v384 = vsel %vm382, %v377, 0
        %v386 = vsel %vm382, %v381, 0
        %388 = vmatprep.subr.mxu0 0.0
        %389 = vmatpush1.xpose.msra.mxu0 0.0
        %390 = vmatprep.subr.mxu0 0.0
        %391 = vmatpush1.xpose.msra.mxu0 0.0
        %392 = vmatprep.subr.mxu0 0.0
        %393 = vmatpush1.xpose.msra.mxu0 0.0
        %394 = vmatprep.subr.mxu0 0.0
        %395 = vmatpush1.xpose.msra.mxu0 0.0
        %396 = vmatprep.subr.mxu0 0.0
        %397 = vmatpush1.xpose.msra.mxu0 0.0
        %398 = vmatprep.subr.mxu0 0.0
        %399 = vmatpush1.xpose.msra.mxu0 0.0
        %400 = vmatprep.subr.mxu0 0.0
        %401 = vmatpush1.xpose.msra.mxu0 0.0
        %402 = vmatprep.subr.mxu0 0.0
        %403 = vmatpush1.xpose.msra.mxu0 0.0
        %404 = vmatprep.subr.mxu0 0.0
        %405 = vmatpush1.xpose.msra.mxu0 0.0
        %406 = vmatprep.subr.mxu0 0.0
        %407 = vmatpush1.xpose.msra.mxu0 0.0
        %408 = vmatprep.subr.mxu0 0.0
        %409 = vmatpush1.xpose.msra.mxu0 0.0
        %410 = vmatprep.subr.mxu0 0.0
        %411 = vmatpush1.xpose.msra.mxu0 0.0
        %412 = vmatprep.subr.mxu0 0.0
        %413 = vmatpush1.xpose.msra.mxu0 0.0
        %414 = vmatprep.subr.mxu0 0.0
        %415 = vmatpush1.xpose.msra.mxu0 0.0
        %416 = vmatprep.subr.mxu0 0.0
        %417 = vmatpush1.xpose.msra.mxu0 0.0
        %418 = vmatprep.subr.mxu0 0.0
        %419 = vmatpush1.xpose.msra.mxu0 %v386
        %420 = vmatprep.subr.mxu0 0.0
        %421 = vmatpush2.xpose.msra.mxu0 0.0
        %422 = vmatprep.subr.mxu0 0.0
        %423 = vmatpush2.xpose.msra.mxu0 0.0
        %424 = vmatprep.subr.mxu0 0.0
        %425 = vmatpush2.xpose.msra.mxu0 0.0
        %426 = vmatprep.subr.mxu0 0.0
        %427 = vmatpush2.xpose.msra.mxu0 0.0
        %428 = vmatprep.subr.mxu0 0.0
        %429 = vmatpush2.xpose.msra.mxu0 0.0
        %430 = vmatprep.subr.mxu0 0.0
        %431 = vmatpush2.xpose.msra.mxu0 0.0
        %432 = vmatprep.subr.mxu0 0.0
        %433 = vmatpush2.xpose.msra.mxu0 0.0
        %434 = vmatprep.subr.mxu0 0.0
        %435 = vmatpush2.xpose.msra.mxu0 0.0
        %436 = vmatprep.subr.mxu0 0.0
        %437 = vmatpush2.xpose.msra.mxu0 0.0
        %438 = vmatprep.subr.mxu0 0.0
        %439 = vmatpush2.xpose.msra.mxu0 0.0
        %440 = vmatprep.subr.mxu0 0.0
        %441 = vmatpush2.xpose.msra.mxu0 0.0
        %442 = vmatprep.subr.mxu0 0.0
        %443 = vmatpush2.xpose.msra.mxu0 0.0
        %444 = vmatprep.subr.mxu0 0.0
        %445 = vmatpush2.xpose.msra.mxu0 0.0
        %446 = vmatprep.subr.mxu0 0.0
        %447 = vmatpush2.xpose.msra.mxu0 0.0
        %448 = vmatprep.subr.mxu0 0.0
        %449 = vmatpush2.xpose.msra.mxu0 0.0
        %450 = vmatprep.subr.mxu0 0.0
        %451 = vmatpush2.xpose.msra.mxu0 0.0
        %452 = vmatprep.mubr.f32.mxu0 0.0
        %453 = vmatmul.mubr.f32.gmra.mxu0 %v384
        %v454 = vpop.f32.mrf.mxu0
        %v455 = vadd.f32 0.0, %v454
        %v456 = vpop.f32.mrf.mxu0
        %457 = vdwg.mxu0
        %v458 = vsel %vm382, %v455, -inf
        %459 = vmax.xlane.f32.xlu0 %v458
        %v460 = vpop.xlane.xlu0 %459
        %v461 = vsub.f32 %v455, %v460
        %v462 = vmul.f32 %v461, 1.442695
        %v463 = vpow.pop %v462
        %v464 = vsel %vm382, %v463, 0.0
        %465 = vadd.xlane.f32.xlu0 %v464
        %v466 = vpop.xlane.xlu0 %465
        %467 = vrot.lane.b32.xlu0 %v378, 64
        %v468 = vpop.permute.xlu0 %467
        %v471 = vsel %vm382, %v463, 0
        %473 = vmatprep.subr.mxu0 0.0
        %474 = vmatpush1.msra.mxu0 0.0
        %475 = vmatprep.subr.mxu0 0.0
        %476 = vmatpush1.msra.mxu0 0.0
        %477 = vmatprep.subr.mxu0 0.0
        %478 = vmatpush1.msra.mxu0 0.0
        %479 = vmatprep.subr.mxu0 0.0
        %480 = vmatpush1.msra.mxu0 0.0
        %481 = vmatprep.subr.mxu0 0.0
        %482 = vmatpush1.msra.mxu0 0.0
        %483 = vmatprep.subr.mxu0 0.0
        %484 = vmatpush1.msra.mxu0 0.0
        %485 = vmatprep.subr.mxu0 0.0
        %486 = vmatpush1.msra.mxu0 0.0
        %487 = vmatprep.subr.mxu0 0.0
        %488 = vmatpush1.msra.mxu0 0.0
        %489 = vmatprep.subr.mxu0 0.0
        %490 = vmatpush1.msra.mxu0 0.0
        %491 = vmatprep.subr.mxu0 0.0
        %492 = vmatpush1.msra.mxu0 0.0
        %493 = vmatprep.subr.mxu0 0.0
        %494 = vmatpush1.msra.mxu0 0.0
        %495 = vmatprep.subr.mxu0 0.0
        %496 = vmatpush1.msra.mxu0 0.0
        %497 = vmatprep.subr.mxu0 0.0
        %498 = vmatpush1.msra.mxu0 0.0
        %499 = vmatprep.subr.mxu0 0.0
        %500 = vmatpush1.msra.mxu0 0.0
        %501 = vmatprep.subr.mxu0 0.0
        %502 = vmatpush1.msra.mxu0 0.0
        %503 = vmatprep.subr.mxu0 0.0
        %504 = vmatpush1.msra.mxu0 %v468
        %505 = vmatprep.subr.mxu0 0.0
        %506 = vmatpush2.msra.mxu0 0.0
        %507 = vmatprep.subr.mxu0 0.0
        %508 = vmatpush2.msra.mxu0 0.0
        %509 = vmatprep.subr.mxu0 0.0
        %510 = vmatpush2.msra.mxu0 0.0
        %511 = vmatprep.subr.mxu0 0.0
        %512 = vmatpush2.msra.mxu0 0.0
        %513 = vmatprep.subr.mxu0 0.0
        %514 = vmatpush2.msra.mxu0 0.0
        %515 = vmatprep.subr.mxu0 0.0
        %516 = vmatpush2.msra.mxu0 0.0
        %517 = vmatprep.subr.mxu0 0.0
        %518 = vmatpush2.msra.mxu0 0.0
        %519 = vmatprep.subr.mxu0 0.0
        %520 = vmatpush2.msra.mxu0 0.0
        %521 = vmatprep.subr.mxu0 0.0
        %522 = vmatpush2.msra.mxu0 0.0
        %523 = vmatprep.subr.mxu0 0.0
        %524 = vmatpush2.msra.mxu0 0.0
        %525 = vmatprep.subr.mxu0 0.0
        %526 = vmatpush2.msra.mxu0 0.0
        %527 = vmatprep.subr.mxu0 0.0
        %528 = vmatpush2.msra.mxu0 0.0
        %529 = vmatprep.subr.mxu0 0.0
        %530 = vmatpush2.msra.mxu0 0.0
        %531 = vmatprep.subr.mxu0 0.0
        %532 = vmatpush2.msra.mxu0 0.0
        %533 = vmatprep.subr.mxu0 0.0
        %534 = vmatpush2.msra.mxu0 0.0
        %535 = vmatprep.subr.mxu0 0.0
        %536 = vmatpush2.msra.mxu0 0.0
        %537 = vmatprep.mubr.f32.mxu0 0.0
        %538 = vmatmul.mubr.f32.gmra.mxu0 %v471
        %v539 = vpop.f32.mrf.mxu0
        %v540 = vadd.f32 0.0, %v539
        %v541 = vpop.f32.mrf.mxu0
        %542 = vdwg.mxu0
        %v543 = vrcp.pop %v466
        %v544 = vmul.f32 %v540, %v543
        %545 = vst.msk [vmem:[#allocation3] sm:$0xff] %vm382, %v544
        %v546 = vld [vmem:[#allocation2] sm:$0xff]
        %547 = vrot.lane.b32.xlu0 %v377, 120
        %v548 = vpop.permute.xlu0 %547
        %550 = vrot.lane.b32.xlu0 %v546, 88
        %v551 = vpop.permute.xlu0 %550
        %v552 = vsel %vm382, %v548, 0
        %v554 = vsel %vm382, %v551, 0
        %556 = vmatprep.subr.mxu0 0.0
        %557 = vmatpush1.xpose.msra.mxu0 0.0
        %558 = vmatprep.subr.mxu0 0.0
        %559 = vmatpush1.xpose.msra.mxu0 0.0
        %560 = vmatprep.subr.mxu0 0.0
        %561 = vmatpush1.xpose.msra.mxu0 0.0
        %562 = vmatprep.subr.mxu0 0.0
        %563 = vmatpush1.xpose.msra.mxu0 0.0
        %564 = vmatprep.subr.mxu0 0.0
        %565 = vmatpush1.xpose.msra.mxu0 0.0
        %566 = vmatprep.subr.mxu0 0.0
        %567 = vmatpush1.xpose.msra.mxu0 0.0
        %568 = vmatprep.subr.mxu0 0.0
        %569 = vmatpush1.xpose.msra.mxu0 0.0
        %570 = vmatprep.subr.mxu0 0.0
        %571 = vmatpush1.xpose.msra.mxu0 0.0
        %572 = vmatprep.subr.mxu0 0.0
        %573 = vmatpush1.xpose.msra.mxu0 0.0
        %574 = vmatprep.subr.mxu0 0.0
        %575 = vmatpush1.xpose.msra.mxu0 0.0
        %576 = vmatprep.subr.mxu0 0.0
        %577 = vmatpush1.xpose.msra.mxu0 0.0
        %578 = vmatprep.subr.mxu0 0.0
        %579 = vmatpush1.xpose.msra.mxu0 0.0
        %580 = vmatprep.subr.mxu0 0.0
        %581 = vmatpush1.xpose.msra.mxu0 0.0
        %582 = vmatprep.subr.mxu0 0.0
        %583 = vmatpush1.xpose.msra.mxu0 0.0
        %584 = vmatprep.subr.mxu0 0.0
        %585 = vmatpush1.xpose.msra.mxu0 0.0
        %586 = vmatprep.subr.mxu0 0.0
        %587 = vmatpush1.xpose.msra.mxu0 %v554
        %588 = vmatprep.subr.mxu0 0.0
        %589 = vmatpush2.xpose.msra.mxu0 0.0
        %590 = vmatprep.subr.mxu0 0.0
        %591 = vmatpush2.xpose.msra.mxu0 0.0
        %592 = vmatprep.subr.mxu0 0.0
        %593 = vmatpush2.xpose.msra.mxu0 0.0
        %594 = vmatprep.subr.mxu0 0.0
        %595 = vmatpush2.xpose.msra.mxu0 0.0
        %596 = vmatprep.subr.mxu0 0.0
        %597 = vmatpush2.xpose.msra.mxu0 0.0
        %598 = vmatprep.subr.mxu0 0.0
        %599 = vmatpush2.xpose.msra.mxu0 0.0
        %600 = vmatprep.subr.mxu0 0.0
        %601 = vmatpush2.xpose.msra.mxu0 0.0
        %602 = vmatprep.subr.mxu0 0.0
        %603 = vmatpush2.xpose.msra.mxu0 0.0
        %604 = vmatprep.subr.mxu0 0.0
        %605 = vmatpush2.xpose.msra.mxu0 0.0
        %606 = vmatprep.subr.mxu0 0.0
        %607 = vmatpush2.xpose.msra.mxu0 0.0
        %608 = vmatprep.subr.mxu0 0.0
        %609 = vmatpush2.xpose.msra.mxu0 0.0
        %610 = vmatprep.subr.mxu0 0.0
        %611 = vmatpush2.xpose.msra.mxu0 0.0
        %612 = vmatprep.subr.mxu0 0.0
        %613 = vmatpush2.xpose.msra.mxu0 0.0
        %614 = vmatprep.subr.mxu0 0.0
        %615 = vmatpush2.xpose.msra.mxu0 0.0
        %616 = vmatprep.subr.mxu0 0.0
        %617 = vmatpush2.xpose.msra.mxu0 0.0
        %618 = vmatprep.subr.mxu0 0.0
        %619 = vmatpush2.xpose.msra.mxu0 0.0
        %620 = vmatprep.mubr.f32.mxu0 0.0
        %621 = vmatmul.mubr.f32.gmra.mxu0 %v552
        %v622 = vpop.f32.mrf.mxu0
        %v623 = vadd.f32 0.0, %v622
        %v624 = vpop.f32.mrf.mxu0
        %625 = vdwg.mxu0
        %v626 = vsel %vm382, %v623, -inf
        %627 = vmax.xlane.f32.xlu0 %v626
        %v628 = vpop.xlane.xlu0 %627
        %v629 = vsub.f32 %v623, %v628
        %v630 = vmul.f32 %v629, 1.442695
        %v631 = vpow.pop %v630
        %v632 = vsel %vm382, %v631, 0.0
        %633 = vadd.xlane.f32.xlu0 %v632
        %v634 = vpop.xlane.xlu0 %633
        %635 = vrot.lane.b32.xlu0 %v546, 56
        %v636 = vpop.permute.xlu0 %635
        %v639 = vsel %vm382, %v631, 0
        %641 = vmatprep.subr.mxu0 0.0
        %642 = vmatpush1.msra.mxu0 0.0
        %643 = vmatprep.subr.mxu0 0.0
        %644 = vmatpush1.msra.mxu0 0.0
        %645 = vmatprep.subr.mxu0 0.0
        %646 = vmatpush1.msra.mxu0 0.0
        %647 = vmatprep.subr.mxu0 0.0
        %648 = vmatpush1.msra.mxu0 0.0
        %649 = vmatprep.subr.mxu0 0.0
        %650 = vmatpush1.msra.mxu0 0.0
        %651 = vmatprep.subr.mxu0 0.0
        %652 = vmatpush1.msra.mxu0 0.0
        %653 = vmatprep.subr.mxu0 0.0
        %654 = vmatpush1.msra.mxu0 0.0
        %655 = vmatprep.subr.mxu0 0.0
        %656 = vmatpush1.msra.mxu0 0.0
        %657 = vmatprep.subr.mxu0 0.0
        %658 = vmatpush1.msra.mxu0 0.0
        %659 = vmatprep.subr.mxu0 0.0
        %660 = vmatpush1.msra.mxu0 0.0
        %661 = vmatprep.subr.mxu0 0.0
        %662 = vmatpush1.msra.mxu0 0.0
        %663 = vmatprep.subr.mxu0 0.0
        %664 = vmatpush1.msra.mxu0 0.0
        %665 = vmatprep.subr.mxu0 0.0
        %666 = vmatpush1.msra.mxu0 0.0
        %667 = vmatprep.subr.mxu0 0.0
        %668 = vmatpush1.msra.mxu0 0.0
        %669 = vmatprep.subr.mxu0 0.0
        %670 = vmatpush1.msra.mxu0 0.0
        %671 = vmatprep.subr.mxu0 0.0
        %672 = vmatpush1.msra.mxu0 %v636
        %673 = vmatprep.subr.mxu0 0.0
        %674 = vmatpush2.msra.mxu0 0.0
        %675 = vmatprep.subr.mxu0 0.0
        %676 = vmatpush2.msra.mxu0 0.0
        %677 = vmatprep.subr.mxu0 0.0
        %678 = vmatpush2.msra.mxu0 0.0
        %679 = vmatprep.subr.mxu0 0.0
        %680 = vmatpush2.msra.mxu0 0.0
        %681 = vmatprep.subr.mxu0 0.0
        %682 = vmatpush2.msra.mxu0 0.0
        %683 = vmatprep.subr.mxu0 0.0
        %684 = vmatpush2.msra.mxu0 0.0
        %685 = vmatprep.subr.mxu0 0.0
        %686 = vmatpush2.msra.mxu0 0.0
        %687 = vmatprep.subr.mxu0 0.0
        %688 = vmatpush2.msra.mxu0 0.0
        %689 = vmatprep.subr.mxu0 0.0
        %690 = vmatpush2.msra.mxu0 0.0
        %691 = vmatprep.subr.mxu0 0.0
        %692 = vmatpush2.msra.mxu0 0.0
        %693 = vmatprep.subr.mxu0 0.0
        %694 = vmatpush2.msra.mxu0 0.0
        %695 = vmatprep.subr.mxu0 0.0
        %696 = vmatpush2.msra.mxu0 0.0
        %697 = vmatprep.subr.mxu0 0.0
        %698 = vmatpush2.msra.mxu0 0.0
        %699 = vmatprep.subr.mxu0 0.0
        %700 = vmatpush2.msra.mxu0 0.0
        %701 = vmatprep.subr.mxu0 0.0
        %702 = vmatpush2.msra.mxu0 0.0
        %703 = vmatprep.subr.mxu0 0.0
        %704 = vmatpush2.msra.mxu0 0.0
        %705 = vmatprep.mubr.f32.mxu0 0.0
        %706 = vmatmul.mubr.f32.gmra.mxu0 %v639
        %v707 = vpop.f32.mrf.mxu0
        %v708 = vadd.f32 0.0, %v707
        %v709 = vpop.f32.mrf.mxu0
        %710 = vdwg.mxu0
        %v711 = vrcp.pop %v634
        %v712 = vmul.f32 %v708, %v711
        %714 = vrot.lane.b32.xlu0 %v712, 8
        %v715 = vpop.permute.xlu0 %714
        %vm717 = vcmask 130112
        %718 = vst.msk [vmem:[#allocation3] sm:$0xff] %vm717, %v715
        %v719 = vld [vmem:[#allocation2] sm:$0xff]
        %720 = vrot.lane.b32.xlu0 %v377, 112
        %v721 = vpop.permute.xlu0 %720
        %723 = vrot.lane.b32.xlu0 %v719, 80
        %v724 = vpop.permute.xlu0 %723
        %v725 = vsel %vm382, %v721, 0
        %v727 = vsel %vm382, %v724, 0
        %729 = vmatprep.subr.mxu0 0.0
        %730 = vmatpush1.xpose.msra.mxu0 0.0
        %731 = vmatprep.subr.mxu0 0.0
        %732 = vmatpush1.xpose.msra.mxu0 0.0
        %733 = vmatprep.subr.mxu0 0.0
        %734 = vmatpush1.xpose.msra.mxu0 0.0
        %735 = vmatprep.subr.mxu0 0.0
        %736 = vmatpush1.xpose.msra.mxu0 0.0
        %737 = vmatprep.subr.mxu0 0.0
        %738 = vmatpush1.xpose.msra.mxu0 0.0
        %739 = vmatprep.subr.mxu0 0.0
        %740 = vmatpush1.xpose.msra.mxu0 0.0
        %741 = vmatprep.subr.mxu0 0.0
        %742 = vmatpush1.xpose.msra.mxu0 0.0
        %743 = vmatprep.subr.mxu0 0.0
        %744 = vmatpush1.xpose.msra.mxu0 0.0
        %745 = vmatprep.subr.mxu0 0.0
        %746 = vmatpush1.xpose.msra.mxu0 0.0
        %747 = vmatprep.subr.mxu0 0.0
        %748 = vmatpush1.xpose.msra.mxu0 0.0
        %749 = vmatprep.subr.mxu0 0.0
        %750 = vmatpush1.xpose.msra.mxu0 0.0
        %751 = vmatprep.subr.mxu0 0.0
        %752 = vmatpush1.xpose.msra.mxu0 0.0
        %753 = vmatprep.subr.mxu0 0.0
        %754 = vmatpush1.xpose.msra.mxu0 0.0
        %755 = vmatprep.subr.mxu0 0.0
        %756 = vmatpush1.xpose.msra.mxu0 0.0
        %757 = vmatprep.subr.mxu0 0.0
        %758 = vmatpush1.xpose.msra.mxu0 0.0
        %759 = vmatprep.subr.mxu0 0.0
        %760 = vmatpush1.xpose.msra.mxu0 %v727
        %761 = vmatprep.subr.mxu0 0.0
        %762 = vmatpush2.xpose.msra.mxu0 0.0
        %763 = vmatprep.subr.mxu0 0.0
        %764 = vmatpush2.xpose.msra.mxu0 0.0
        %765 = vmatprep.subr.mxu0 0.0
        %766 = vmatpush2.xpose.msra.mxu0 0.0
        %767 = vmatprep.subr.mxu0 0.0
        %768 = vmatpush2.xpose.msra.mxu0 0.0
        %769 = vmatprep.subr.mxu0 0.0
        %770 = vmatpush2.xpose.msra.mxu0 0.0
        %771 = vmatprep.subr.mxu0 0.0
        %772 = vmatpush2.xpose.msra.mxu0 0.0
        %773 = vmatprep.subr.mxu0 0.0
        %774 = vmatpush2.xpose.msra.mxu0 0.0
        %775 = vmatprep.subr.mxu0 0.0
        %776 = vmatpush2.xpose.msra.mxu0 0.0
        %777 = vmatprep.subr.mxu0 0.0
        %778 = vmatpush2.xpose.msra.mxu0 0.0
        %779 = vmatprep.subr.mxu0 0.0
        %780 = vmatpush2.xpose.msra.mxu0 0.0
        %781 = vmatprep.subr.mxu0 0.0
        %782 = vmatpush2.xpose.msra.mxu0 0.0
        %783 = vmatprep.subr.mxu0 0.0
        %784 = vmatpush2.xpose.msra.mxu0 0.0
        %785 = vmatprep.subr.mxu0 0.0
        %786 = vmatpush2.xpose.msra.mxu0 0.0
        %787 = vmatprep.subr.mxu0 0.0
        %788 = vmatpush2.xpose.msra.mxu0 0.0
        %789 = vmatprep.subr.mxu0 0.0
        %790 = vmatpush2.xpose.msra.mxu0 0.0
        %791 = vmatprep.subr.mxu0 0.0
        %792 = vmatpush2.xpose.msra.mxu0 0.0
        %793 = vmatprep.mubr.f32.mxu0 0.0
        %794 = vmatmul.mubr.f32.gmra.mxu0 %v725
        %v795 = vpop.f32.mrf.mxu0
        %v796 = vadd.f32 0.0, %v795
        %v797 = vpop.f32.mrf.mxu0
        %798 = vdwg.mxu0
        %v799 = vsel %vm382, %v796, -inf
        %800 = vmax.xlane.f32.xlu0 %v799
        %v801 = vpop.xlane.xlu0 %800
        %v802 = vsub.f32 %v796, %v801
        %v803 = vmul.f32 %v802, 1.442695
        %v804 = vpow.pop %v803
        %v805 = vsel %vm382, %v804, 0.0
        %806 = vadd.xlane.f32.xlu0 %v805
        %v807 = vpop.xlane.xlu0 %806
        %808 = vrot.lane.b32.xlu0 %v719, 48
        %v809 = vpop.permute.xlu0 %808
        %v812 = vsel %vm382, %v804, 0
        %814 = vmatprep.subr.mxu0 0.0
        %815 = vmatpush1.msra.mxu0 0.0
        %816 = vmatprep.subr.mxu0 0.0
        %817 = vmatpush1.msra.mxu0 0.0
        %818 = vmatprep.subr.mxu0 0.0
        %819 = vmatpush1.msra.mxu0 0.0
        %820 = vmatprep.subr.mxu0 0.0
        %821 = vmatpush1.msra.mxu0 0.0
        %822 = vmatprep.subr.mxu0 0.0
        %823 = vmatpush1.msra.mxu0 0.0
        %824 = vmatprep.subr.mxu0 0.0
        %825 = vmatpush1.msra.mxu0 0.0
        %826 = vmatprep.subr.mxu0 0.0
        %827 = vmatpush1.msra.mxu0 0.0
        %828 = vmatprep.subr.mxu0 0.0
        %829 = vmatpush1.msra.mxu0 0.0
        %830 = vmatprep.subr.mxu0 0.0
        %831 = vmatpush1.msra.mxu0 0.0
        %832 = vmatprep.subr.mxu0 0.0
        %833 = vmatpush1.msra.mxu0 0.0
        %834 = vmatprep.subr.mxu0 0.0
        %835 = vmatpush1.msra.mxu0 0.0
        %836 = vmatprep.subr.mxu0 0.0
        %837 = vmatpush1.msra.mxu0 0.0
        %838 = vmatprep.subr.mxu0 0.0
        %839 = vmatpush1.msra.mxu0 0.0
        %840 = vmatprep.subr.mxu0 0.0
        %841 = vmatpush1.msra.mxu0 0.0
        %842 = vmatprep.subr.mxu0 0.0
        %843 = vmatpush1.msra.mxu0 0.0
        %844 = vmatprep.subr.mxu0 0.0
        %845 = vmatpush1.msra.mxu0 %v809
        %846 = vmatprep.subr.mxu0 0.0
        %847 = vmatpush2.msra.mxu0 0.0
        %848 = vmatprep.subr.mxu0 0.0
        %849 = vmatpush2.msra.mxu0 0.0
        %850 = vmatprep.subr.mxu0 0.0
        %851 = vmatpush2.msra.mxu0 0.0
        %852 = vmatprep.subr.mxu0 0.0
        %853 = vmatpush2.msra.mxu0 0.0
        %854 = vmatprep.subr.mxu0 0.0
        %855 = vmatpush2.msra.mxu0 0.0
        %856 = vmatprep.subr.mxu0 0.0
        %857 = vmatpush2.msra.mxu0 0.0
        %858 = vmatprep.subr.mxu0 0.0
        %859 = vmatpush2.msra.mxu0 0.0
        %860 = vmatprep.subr.mxu0 0.0
        %861 = vmatpush2.msra.mxu0 0.0
        %862 = vmatprep.subr.mxu0 0.0
        %863 = vmatpush2.msra.mxu0 0.0
        %864 = vmatprep.subr.mxu0 0.0
        %865 = vmatpush2.msra.mxu0 0.0
        %866 = vmatprep.subr.mxu0 0.0
        %867 = vmatpush2.msra.mxu0 0.0
        %868 = vmatprep.subr.mxu0 0.0
        %869 = vmatpush2.msra.mxu0 0.0
        %870 = vmatprep.subr.mxu0 0.0
        %871 = vmatpush2.msra.mxu0 0.0
        %872 = vmatprep.subr.mxu0 0.0
        %873 = vmatpush2.msra.mxu0 0.0
        %874 = vmatprep.subr.mxu0 0.0
        %875 = vmatpush2.msra.mxu0 0.0
        %876 = vmatprep.subr.mxu0 0.0
        %877 = vmatpush2.msra.mxu0 0.0
        %878 = vmatprep.mubr.f32.mxu0 0.0
        %879 = vmatmul.mubr.f32.gmra.mxu0 %v812
        %v880 = vpop.f32.mrf.mxu0
        %v881 = vadd.f32 0.0, %v880
        %v882 = vpop.f32.mrf.mxu0
        %883 = vdwg.mxu0
        %v884 = vrcp.pop %v807
        %v885 = vmul.f32 %v881, %v884
        %887 = vrot.lane.b32.xlu0 %v885, 16
        %v888 = vpop.permute.xlu0 %887
        %vm890 = vcmask 195712
        %891 = vst.msk [vmem:[#allocation3] sm:$0xff] %vm890, %v888
        %v892 = vld [vmem:[#allocation2] sm:$0xff]
        %893 = vrot.lane.b32.xlu0 %v377, 104
        %v894 = vpop.permute.xlu0 %893
        %896 = vrot.lane.b32.xlu0 %v892, 72
        %v897 = vpop.permute.xlu0 %896
        %v898 = vsel %vm382, %v894, 0
        %v900 = vsel %vm382, %v897, 0
        %902 = vmatprep.subr.mxu0 0.0
        %903 = vmatpush1.xpose.msra.mxu0 0.0
        %904 = vmatprep.subr.mxu0 0.0
        %905 = vmatpush1.xpose.msra.mxu0 0.0
        %906 = vmatprep.subr.mxu0 0.0
        %907 = vmatpush1.xpose.msra.mxu0 0.0
        %908 = vmatprep.subr.mxu0 0.0
        %909 = vmatpush1.xpose.msra.mxu0 0.0
        %910 = vmatprep.subr.mxu0 0.0
        %911 = vmatpush1.xpose.msra.mxu0 0.0
        %912 = vmatprep.subr.mxu0 0.0
        %913 = vmatpush1.xpose.msra.mxu0 0.0
        %914 = vmatprep.subr.mxu0 0.0
        %915 = vmatpush1.xpose.msra.mxu0 0.0
        %916 = vmatprep.subr.mxu0 0.0
        %917 = vmatpush1.xpose.msra.mxu0 0.0
        %918 = vmatprep.subr.mxu0 0.0
        %919 = vmatpush1.xpose.msra.mxu0 0.0
        %920 = vmatprep.subr.mxu0 0.0
        %921 = vmatpush1.xpose.msra.mxu0 0.0
        %922 = vmatprep.subr.mxu0 0.0
        %923 = vmatpush1.xpose.msra.mxu0 0.0
        %924 = vmatprep.subr.mxu0 0.0
        %925 = vmatpush1.xpose.msra.mxu0 0.0
        %926 = vmatprep.subr.mxu0 0.0
        %927 = vmatpush1.xpose.msra.mxu0 0.0
        %928 = vmatprep.subr.mxu0 0.0
        %929 = vmatpush1.xpose.msra.mxu0 0.0
        %930 = vmatprep.subr.mxu0 0.0
        %931 = vmatpush1.xpose.msra.mxu0 0.0
        %932 = vmatprep.subr.mxu0 0.0
        %933 = vmatpush1.xpose.msra.mxu0 %v900
        %934 = vmatprep.subr.mxu0 0.0
        %935 = vmatpush2.xpose.msra.mxu0 0.0
        %936 = vmatprep.subr.mxu0 0.0
        %937 = vmatpush2.xpose.msra.mxu0 0.0
        %938 = vmatprep.subr.mxu0 0.0
        %939 = vmatpush2.xpose.msra.mxu0 0.0
        %940 = vmatprep.subr.mxu0 0.0
        %941 = vmatpush2.xpose.msra.mxu0 0.0
        %942 = vmatprep.subr.mxu0 0.0
        %943 = vmatpush2.xpose.msra.mxu0 0.0
        %944 = vmatprep.subr.mxu0 0.0
        %945 = vmatpush2.xpose.msra.mxu0 0.0
        %946 = vmatprep.subr.mxu0 0.0
        %947 = vmatpush2.xpose.msra.mxu0 0.0
        %948 = vmatprep.subr.mxu0 0.0
        %949 = vmatpush2.xpose.msra.mxu0 0.0
        %950 = vmatprep.subr.mxu0 0.0
        %951 = vmatpush2.xpose.msra.mxu0 0.0
        %952 = vmatprep.subr.mxu0 0.0
        %953 = vmatpush2.xpose.msra.mxu0 0.0
        %954 = vmatprep.subr.mxu0 0.0
        %955 = vmatpush2.xpose.msra.mxu0 0.0
        %956 = vmatprep.subr.mxu0 0.0
        %957 = vmatpush2.xpose.msra.mxu0 0.0
        %958 = vmatprep.subr.mxu0 0.0
        %959 = vmatpush2.xpose.msra.mxu0 0.0
        %960 = vmatprep.subr.mxu0 0.0
        %961 = vmatpush2.xpose.msra.mxu0 0.0
        %962 = vmatprep.subr.mxu0 0.0
        %963 = vmatpush2.xpose.msra.mxu0 0.0
        %964 = vmatprep.subr.mxu0 0.0
        %965 = vmatpush2.xpose.msra.mxu0 0.0
        %966 = vmatprep.mubr.f32.mxu0 0.0
        %967 = vmatmul.mubr.f32.gmra.mxu0 %v898
        %v968 = vpop.f32.mrf.mxu0
        %v969 = vadd.f32 0.0, %v968
        %v970 = vpop.f32.mrf.mxu0
        %971 = vdwg.mxu0
        %v972 = vsel %vm382, %v969, -inf
        %973 = vmax.xlane.f32.xlu0 %v972
        %v974 = vpop.xlane.xlu0 %973
        %v975 = vsub.f32 %v969, %v974
        %v976 = vmul.f32 %v975, 1.442695
        %v977 = vpow.pop %v976
        %v978 = vsel %vm382, %v977, 0.0
        %979 = vadd.xlane.f32.xlu0 %v978
        %v980 = vpop.xlane.xlu0 %979
        %981 = vrot.lane.b32.xlu0 %v892, 40
        %v982 = vpop.permute.xlu0 %981
        %v985 = vsel %vm382, %v977, 0
        %987 = vmatprep.subr.mxu0 0.0
        %988 = vmatpush1.msra.mxu0 0.0
        %989 = vmatprep.subr.mxu0 0.0
        %990 = vmatpush1.msra.mxu0 0.0
        %991 = vmatprep.subr.mxu0 0.0
        %992 = vmatpush1.msra.mxu0 0.0
        %993 = vmatprep.subr.mxu0 0.0
        %994 = vmatpush1.msra.mxu0 0.0
        %995 = vmatprep.subr.mxu0 0.0
        %996 = vmatpush1.msra.mxu0 0.0
        %997 = vmatprep.subr.mxu0 0.0
        %998 = vmatpush1.msra.mxu0 0.0
        %999 = vmatprep.subr.mxu0 0.0
        %1000 = vmatpush1.msra.mxu0 0.0
        %1001 = vmatprep.subr.mxu0 0.0
        %1002 = vmatpush1.msra.mxu0 0.0
        %1003 = vmatprep.subr.mxu0 0.0
        %1004 = vmatpush1.msra.mxu0 0.0
        %1005 = vmatprep.subr.mxu0 0.0
        %1006 = vmatpush1.msra.mxu0 0.0
        %1007 = vmatprep.subr.mxu0 0.0
        %1008 = vmatpush1.msra.mxu0 0.0
        %1009 = vmatprep.subr.mxu0 0.0
        %1010 = vmatpush1.msra.mxu0 0.0
        %1011 = vmatprep.subr.mxu0 0.0
        %1012 = vmatpush1.msra.mxu0 0.0
        %1013 = vmatprep.subr.mxu0 0.0
        %1014 = vmatpush1.msra.mxu0 0.0
        %1015 = vmatprep.subr.mxu0 0.0
        %1016 = vmatpush1.msra.mxu0 0.0
        %1017 = vmatprep.subr.mxu0 0.0
        %1018 = vmatpush1.msra.mxu0 %v982
        %1019 = vmatprep.subr.mxu0 0.0
        %1020 = vmatpush2.msra.mxu0 0.0
        %1021 = vmatprep.subr.mxu0 0.0
        %1022 = vmatpush2.msra.mxu0 0.0
        %1023 = vmatprep.subr.mxu0 0.0
        %1024 = vmatpush2.msra.mxu0 0.0
        %1025 = vmatprep.subr.mxu0 0.0
        %1026 = vmatpush2.msra.mxu0 0.0
        %1027 = vmatprep.subr.mxu0 0.0
        %1028 = vmatpush2.msra.mxu0 0.0
        %1029 = vmatprep.subr.mxu0 0.0
        %1030 = vmatpush2.msra.mxu0 0.0
        %1031 = vmatprep.subr.mxu0 0.0
        %1032 = vmatpush2.msra.mxu0 0.0
        %1033 = vmatprep.subr.mxu0 0.0
        %1034 = vmatpush2.msra.mxu0 0.0
        %1035 = vmatprep.subr.mxu0 0.0
        %1036 = vmatpush2.msra.mxu0 0.0
        %1037 = vmatprep.subr.mxu0 0.0
        %1038 = vmatpush2.msra.mxu0 0.0
        %1039 = vmatprep.subr.mxu0 0.0
        %1040 = vmatpush2.msra.mxu0 0.0
        %1041 = vmatprep.subr.mxu0 0.0
        %1042 = vmatpush2.msra.mxu0 0.0
        %1043 = vmatprep.subr.mxu0 0.0
        %1044 = vmatpush2.msra.mxu0 0.0
        %1045 = vmatprep.subr.mxu0 0.0
        %1046 = vmatpush2.msra.mxu0 0.0
        %1047 = vmatprep.subr.mxu0 0.0
        %1048 = vmatpush2.msra.mxu0 0.0
        %1049 = vmatprep.subr.mxu0 0.0
        %1050 = vmatpush2.msra.mxu0 0.0
        %1051 = vmatprep.mubr.f32.mxu0 0.0
        %1052 = vmatmul.mubr.f32.gmra.mxu0 %v985
        %v1053 = vpop.f32.mrf.mxu0
        %v1054 = vadd.f32 0.0, %v1053
        %v1055 = vpop.f32.mrf.mxu0
        %1056 = vdwg.mxu0
        %v1057 = vrcp.pop %v980
        %v1058 = vmul.f32 %v1054, %v1057
        %1060 = vrot.lane.b32.xlu0 %v1058, 24
        %v1061 = vpop.permute.xlu0 %1060
        %vm1063 = vcmask 261312
        %1064 = vst.msk [vmem:[#allocation3] sm:$0xff] %vm1063, %v1061
        %v1065 = vld [vmem:[#allocation3] sm:$0xff]
        %v1066 = vld [vmem:[#allocation9] sm:$0xff]
        %v1067 = vld [vmem:[#allocation9 + $0x8] sm:$0xff]
        %v1068 = vld [vmem:[#allocation9 + $0x10] sm:$0xff]
        %v1069 = vld [vmem:[#allocation9 + $0x18] sm:$0xff]
        %v1070 = vld [vmem:[%s4] sm:$0x1]
        %v1072 = vlaneseq
        %v1073 = vshrl.u32 %v1072, 7
        %v1074 = vsub.s32 0, %v1073
        %v1075 = vrot.slane %v1070, %v1074
        %vm1077 = vcmask 261120
        %v1079 = vsel %vm1077, %v1065, 0
        %1081 = vmatprep.subr.mxu0 0.0
        %1082 = vmatpush1.msra.mxu0 0.0
        %1083 = vmatprep.subr.mxu0 0.0
        %1084 = vmatpush1.msra.mxu0 0.0
        %1085 = vmatprep.subr.mxu0 0.0
        %1086 = vmatpush1.msra.mxu0 0.0
        %1087 = vmatprep.subr.mxu0 0.0
        %1088 = vmatpush1.msra.mxu0 0.0
        %1089 = vmatprep.subr.mxu0 0.0
        %1090 = vmatpush1.msra.mxu0 0.0
        %1091 = vmatprep.subr.mxu0 0.0
        %1092 = vmatpush1.msra.mxu0 0.0
        %1093 = vmatprep.subr.mxu0 0.0
        %1094 = vmatpush1.msra.mxu0 0.0
        %1095 = vmatprep.subr.mxu0 0.0
        %1096 = vmatpush1.msra.mxu0 0.0
        %1097 = vmatprep.subr.mxu0 0.0
        %1098 = vmatpush1.msra.mxu0 0.0
        %1099 = vmatprep.subr.mxu0 0.0
        %1100 = vmatpush1.msra.mxu0 0.0
        %1101 = vmatprep.subr.mxu0 0.0
        %1102 = vmatpush1.msra.mxu0 0.0
        %1103 = vmatprep.subr.mxu0 0.0
        %1104 = vmatpush1.msra.mxu0 0.0
        %1105 = vmatprep.subr.mxu0 0.0
        %1106 = vmatpush1.msra.mxu0 %v1069
        %1107 = vmatprep.subr.mxu0 0.0
        %1108 = vmatpush1.msra.mxu0 %v1068
        %1109 = vmatprep.subr.mxu0 0.0
        %1110 = vmatpush1.msra.mxu0 %v1067
        %1111 = vmatprep.subr.mxu0 0.0
        %1112 = vmatpush1.msra.mxu0 %v1066
        %1113 = vmatprep.subr.mxu0 0.0
        %1114 = vmatpush2.msra.mxu0 0.0
        %1115 = vmatprep.subr.mxu0 0.0
        %1116 = vmatpush2.msra.mxu0 0.0
        %1117 = vmatprep.subr.mxu0 0.0
        %1118 = vmatpush2.msra.mxu0 0.0
        %1119 = vmatprep.subr.mxu0 0.0
        %1120 = vmatpush2.msra.mxu0 0.0
        %1121 = vmatprep.subr.mxu0 0.0
        %1122 = vmatpush2.msra.mxu0 0.0
        %1123 = vmatprep.subr.mxu0 0.0
        %1124 = vmatpush2.msra.mxu0 0.0
        %1125 = vmatprep.subr.mxu0 0.0
        %1126 = vmatpush2.msra.mxu0 0.0
        %1127 = vmatprep.subr.mxu0 0.0
        %1128 = vmatpush2.msra.mxu0 0.0
        %1129 = vmatprep.subr.mxu0 0.0
        %1130 = vmatpush2.msra.mxu0 0.0
        %1131 = vmatprep.subr.mxu0 0.0
        %1132 = vmatpush2.msra.mxu0 0.0
        %1133 = vmatprep.subr.mxu0 0.0
        %1134 = vmatpush2.msra.mxu0 0.0
        %1135 = vmatprep.subr.mxu0 0.0
        %1136 = vmatpush2.msra.mxu0 0.0
        %1137 = vmatprep.subr.mxu0 0.0
        %1138 = vmatpush2.msra.mxu0 0.0
        %1139 = vmatprep.subr.mxu0 0.0
        %1140 = vmatpush2.msra.mxu0 0.0
        %1141 = vmatprep.subr.mxu0 0.0
        %1142 = vmatpush2.msra.mxu0 0.0
        %1143 = vmatprep.subr.mxu0 0.0
        %1144 = vmatpush2.msra.mxu0 0.0
        %1145 = vmatprep.mubr.f32.mxu0 0.0
        %1146 = vmatmul.mubr.f32.gmra.mxu0 %v1079
        %v1147 = vpop.f32.mrf.mxu0
        %v1148 = vadd.f32 %v1075, %v1147
        %v1149 = vpop.f32.mrf.mxu0
        %1150 = vdwg.mxu0
        %1151 = vst.msk [vmem:[%s282] sm:$0xff] %vm1077, %v1148
        %s1152 = sand.u32 %s155, 1
        %s1153 = scalar_lea.sflag [#allocation6], %s1152
        %s1154 = sand.u32 %s155, 1
        %s1155 = smul.addr %s1154, 8
        %s1156 = scalar_lea.vmem [#allocation10], %s1155
        // Predicated region
        $region57: #{tpu_custom_call.1} parent=39 // pred_check
          %p1157 = pneg %p165
        $region58: #{tpu_custom_call.1} parent=39 // pred_check_branch
          %1159 = sbr.rel (%p1157) target = $region60
        $region59: #{tpu_custom_call.1} parent=39 // pred_region
          %s1161 = ssub.s32 128, 128
          %1162 = vsyncadd %s1153, %s1161
          %s1163 = sadd.s32 %s28, %s27
          %s1164 = smul.addr %s1163, 128
          %s1165 = scalar_lea.hbm %s5, %s1164
          %s1167 = sshll.u32 %s1156, 4
          %s1168 = int_to_ptr.vmem [resolvable:$true] %s1167
          %1170 = dma.vmem_to_hbm [thread:$0]  %s1168, 128, %s1165, %s1153
        $region60: #{tpu_custom_call.1} parent=39 // pred_fallthru
          _
      $region40: #{tpu_custom_call.1} parent=5 // pred_fallthru
        _
      %p1171 = scmp.le.s32.totalorder 2, %s18
      // Predicated region
      $region61: #{tpu_custom_call.1} parent=5 // pred_check
        %p1172 = pneg %p1171
      $region62: #{tpu_custom_call.1} parent=5 // pred_check_branch
        %1174 = sbr.rel (%p1172) target = $region64
      $region63: #{tpu_custom_call.1} parent=5 // pred_region
        %s1175 = ssub.s32 %s18, 2
        // Predicated region
        $region65: #{tpu_custom_call.1} parent=63 // pred_check
          %p1176 = pneg %p171
        $region66: #{tpu_custom_call.1} parent=63 // pred_check_branch
          %1178 = sbr.rel (%p1176) target = $region68
        $region67: #{tpu_custom_call.1} parent=63 // pred_region
          %s1179 = sand.u32 %s156, 1
          %s1180 = scalar_lea.sflag [#allocation6], %s1179
          %s1181 = sand.u32 %s156, 1
          %s1182 = smul.addr %s1181, 8
          %s1183 = scalar_lea.vmem [#allocation10], %s1182
          %1184 = dma.done %s1180, 128
        $region68: #{tpu_custom_call.1} parent=63 // pred_fallthru
          _
      $region64: #{tpu_custom_call.1} parent=5 // pred_fallthru
        _
    $region6: #{tpu_custom_call.1} parent=1 // loop_footer
      %s22 = sadd.s32 1, %s18
    $region7: #{tpu_custom_call.1} parent=1 // loop_footer_branch
      %17 = sbr.rel target = $region3
    $region8: #{tpu_custom_call.1} parent=1 // loop_exit
      _
    %1185 = vsyncpa [#allocation5], 1
    %s1186 = scalar_lea.sflag [#allocation5], 1
    %1187 = vsyncpa %s1186, 1
    %1188 = vsyncpa [#allocation8], 1
    %1189 = vsyncpa [#allocation6], 1
    %s1190 = scalar_lea.sflag [#allocation6], 1
    %1191 = vsyncpa %s1190, 1

</llo_original>
